<compile_context>
chip_gen: v5e
topology: v5e:2x2
jax: 0.10.0
libtpu: 0.0.40
codegen_flags: <defaults>
</compile_context>

<pallas_src>
import functools

import jax
import jax.numpy as jnp
from jax.experimental import pallas as pl
from jax.experimental.pallas import tpu as pltpu


def _gap_kernel(x_ref, o_ref, acc_ref, *, hw, tile_hw, needs_mask):
    """x_ref: (TILE_R, TILE_HW) input tile; o_ref: (TILE_R, 1); acc_ref: f32 scratch."""
    k = pl.program_id(1)  # hw (reduction) axis — last grid dim, "arbitrary"

    @pl.when(k == 0)
    def _():
        acc_ref[...] = jnp.zeros_like(acc_ref)

    x = x_ref[...].astype(jnp.float32)
    if needs_mask:
        # Ragged tail along hw: zero out lanes past the true extent.
        col = jax.lax.broadcasted_iota(jnp.int32, x.shape, 1) + k * tile_hw
        x = jnp.where(col < hw, x, 0.0)

    acc_ref[...] += jnp.sum(x, axis=-1, keepdims=True)

    @pl.when(k == pl.num_programs(1) - 1)
    def _():
        # Single constant multiply in the epilogue (1/hw folded at trace time).
        o_ref[...] = (acc_ref[...] * (1.0 / hw)).astype(o_ref.dtype)


def _round_up(x, m):
    return ((x + m - 1) // m) * m


def _choose_tiles(rows, hw, itemsize):
    """Pick (tile_r, tile_hw) so one input block is ~4 MiB (x2 double-buffered)."""
    max_tile_hw = 8192                     # lanes per hw tile when tiling hw (mult. of 128)
    block_budget = 4 * 1024 * 1024         # bytes per input block
    sublane = max(8, 32 // itemsize)       # 8 for f32, 16 for bf16, 32 for int8/fp8

    if hw <= max_tile_hw:
        tile_hw = hw                       # full-extent block along hw (always legal)
    else:
        tile_hw = max_tile_hw              # multiple of 128; mask the ragged tail

    tile_r = block_budget // max(1, tile_hw * itemsize)
    tile_r = max(sublane, (tile_r // sublane) * sublane)
    tile_r = min(tile_r, 1024)
    tile_r = min(tile_r, _round_up(rows, sublane))
    return tile_r, tile_hw


def global_avg_pool2d(x):
    """x: (N, C, H, W) -> (N, C, 1, 1), matching nn.AdaptiveAvgPool2d((1,1))."""
    N, C, H, W = x.shape
    rows = N * C
    hw = H * W
    x2 = x.reshape(rows, hw)

    itemsize = jnp.dtype(x.dtype).itemsize
    tile_r, tile_hw = _choose_tiles(rows, hw, itemsize)
    n_r = pl.cdiv(rows, tile_r)
    n_hw = pl.cdiv(hw, tile_hw)
    needs_mask = (hw % tile_hw) != 0

    kernel = functools.partial(
        _gap_kernel, hw=hw, tile_hw=tile_hw, needs_mask=needs_mask
    )

    out = pl.pallas_call(
        kernel,
        out_shape=jax.ShapeDtypeStruct((rows, 1), x.dtype),
        grid=(n_r, n_hw),
        in_specs=[pl.BlockSpec((tile_r, tile_hw), lambda i, k: (i, k))],
        out_specs=pl.BlockSpec((tile_r, 1), lambda i, k: (i, 0)),
        scratch_shapes=[pltpu.VMEM((tile_r, 1), jnp.float32)],
        compiler_params=pltpu.CompilerParams(
            # rows are independent (megacore-parallel on v7x); hw is the
            # sequential reduction / accumulation axis.
            dimension_semantics=("parallel", "arbitrary"),
        ),
    )(x2)

    return out.reshape(N, C, 1, 1)


if __name__ == "__main__":
    key = jax.random.PRNGKey(0)

    # Small NCHW input consistent with the module's forward (batch=2, channels=4, 16x16).
    x = jax.random.normal(key, (2, 4, 16, 16), dtype=jnp.float32)
    y = global_avg_pool2d(x)
    jax.block_until_ready(y)

    y_ref = jnp.mean(x, axis=(2, 3), keepdims=True)
    assert y.shape == (2, 4, 1, 1)
    assert jnp.allclose(y, y_ref, atol=1e-5, rtol=1e-5)

    # Second small case exercising the multi-tile hw path + ragged-tail masking
    # (hw = 100*100 = 10000 > 8192 -> two hw tiles, last one masked).
    key2 = jax.random.PRNGKey(1)
    x2 = jax.random.normal(key2, (2, 4, 100, 100), dtype=jnp.float32)
    y2 = global_avg_pool2d(x2)
    jax.block_until_ready(y2)
    y2_ref = jnp.mean(x2, axis=(2, 3), keepdims=True)
    assert y2.shape == (2, 4, 1, 1)
    assert jnp.allclose(y2, y2_ref, atol=1e-5, rtol=1e-5)

    print("KERNEL_OK")
</pallas_src>

<mosaic_0001>
module attributes {stable_mosaic.version = 11 : i64} {
  func.func @_gap_kernel(%arg0: i32, %arg1: i32, %arg2: memref<8x256xf32, #tpu.memory_space<vmem>>, %arg3: memref<8x1xf32, #tpu.memory_space<vmem>>, %arg4: memref<8x1xf32, #tpu.memory_space<vmem>>) attributes {dimension_semantics = [#tpu.dimension_semantics<parallel>, #tpu.dimension_semantics<arbitrary>], iteration_bounds = array<i64: 1, 1>, scalar_prefetch = 0 : i64, scratch_operands = 1 : i64, tpu.core_type = #tpu.core_type<tc>, window_params = [{transform_indices = @transform_0, window_bounds = array<i64: 8, 256>}, {transform_indices = @transform_1, window_bounds = array<i64: 8, 1>}]} {
    %c0_i32 = arith.constant 0 : i32
    %0 = arith.cmpi eq, %arg1, %c0_i32 : i32
    %1 = arith.extui %0 : i1 to i32
    %c0_i32_0 = arith.constant 0 : i32
    %2 = arith.cmpi ne, %1, %c0_i32_0 : i32
    scf.if %2 {
      %cst_8 = arith.constant 0.000000e+00 : f32
      %12 = vector.broadcast %cst_8 : f32 to vector<8x1xf32>
      %c0_9 = arith.constant 0 : index
      %c0_10 = arith.constant 0 : index
      %13 = vector.load %arg4[%c0_9, %c0_10] : memref<8x1xf32, #tpu.memory_space<vmem>>, vector<8x1xf32>
      tpu.vector_store %arg4[%c0_9, %c0_10], %12 {strides = array<i32>} : memref<8x1xf32, #tpu.memory_space<vmem>>, vector<8x1xf32>,
    } else {
    }
    %c0 = arith.constant 0 : index
    %c0_1 = arith.constant 0 : index
    %3 = vector.load %arg2[%c0, %c0_1] : memref<8x256xf32, #tpu.memory_space<vmem>>, vector<8x256xf32>
    %c0_2 = arith.constant 0 : index
    %c0_3 = arith.constant 0 : index
    %4 = vector.load %arg4[%c0_2, %c0_3] : memref<8x1xf32, #tpu.memory_space<vmem>>, vector<8x1xf32>
    %cst = arith.constant dense<0.000000e+00> : vector<8xf32>
    %5 = vector.multi_reduction <add>, %3, %cst [1] : vector<8x256xf32> to vector<8xf32>
    %6 = vector.shape_cast %5 : vector<8xf32> to vector<8x1xf32>
    %7 = arith.addf %4, %6 : vector<8x1xf32>
    %c0_4 = arith.constant 0 : index
    %c0_5 = arith.constant 0 : index
    %8 = vector.load %arg4[%c0_4, %c0_5] : memref<8x1xf32, #tpu.memory_space<vmem>>, vector<8x1xf32>
    tpu.vector_store %arg4[%c0_4, %c0_5], %7 {strides = array<i32>} : memref<8x1xf32, #tpu.memory_space<vmem>>, vector<8x1xf32>,
    %c0_i32_6 = arith.constant 0 : i32
    %9 = arith.cmpi eq, %arg1, %c0_i32_6 : i32
    %10 = arith.extui %9 : i1 to i32
    %c0_i32_7 = arith.constant 0 : i32
    %11 = arith.cmpi ne, %10, %c0_i32_7 : i32
    scf.if %11 {
      %c0_8 = arith.constant 0 : index
      %c0_9 = arith.constant 0 : index
      %12 = vector.load %arg4[%c0_8, %c0_9] : memref<8x1xf32, #tpu.memory_space<vmem>>, vector<8x1xf32>
      %cst_10 = arith.constant 3.906250e-03 : f32
      %13 = vector.broadcast %cst_10 : f32 to vector<8x1xf32>
      %14 = arith.mulf %12, %13 : vector<8x1xf32>
      %c0_11 = arith.constant 0 : index
      %c0_12 = arith.constant 0 : index
      %15 = vector.load %arg3[%c0_11, %c0_12] : memref<8x1xf32, #tpu.memory_space<vmem>>, vector<8x1xf32>
      tpu.vector_store %arg3[%c0_11, %c0_12], %14 {strides = array<i32>} : memref<8x1xf32, #tpu.memory_space<vmem>>, vector<8x1xf32>,
    } else {
    }
    return
  }
  func.func @transform_0(%arg0: i32, %arg1: i32) -> (i32, i32) {
    %c0_i32 = arith.constant 0 : i32
    return %arg0, %arg1 : i32, i32
  }
  func.func @transform_1(%arg0: i32, %arg1: i32) -> (i32, i32) {
    %c0_i32 = arith.constant 0 : i32
    %c0_i32_0 = arith.constant 0 : i32
    return %arg0, %c0_i32 : i32, i32
  }
}

</mosaic_0001>

<llo_original>
// kernel: tpu_custom_call.1
$region0: #{tpu_custom_call.1}
  #allocation0 [shape = 'u32[]', space=smem, size = 0x4, offset = 0x4, fixed_abs, tag = 'smem constant byte address 0x4 - core index']
  #allocation1 [shape = 'u32[72,128]{1,0:T(1,128)}', space=vmem, size = 0x9000, scoped, tag = 'internal scratch']
  #allocation2 [shape = 'f32[8,1]{1,0:T(8,128)}', space=vmem, size = 0x1000, scoped, tag = 'scratch operand']
  %s0 = inlined_call_operand.hbm [shape: f32[8,256], index: 0, kind: input, shape index: {}]
  %s1 = inlined_call_operand.vmem [shape: f32[8,1], index: 1, kind: output, shape index: {}]
  %s2 = sld [smem:[#allocation0]]
  $region26: #{tpu_custom_call.1} parent=0
    _
  %s4 = ssub.s32 1, %s2
  %s5 = scalar_select 0, %s4, %s2
  $region1: #{tpu_custom_call.1} parent=0
    #allocation3 [shape = 'u8[8192]{0}', space=vmem, size = 0x2000, scoped, tag = 'input window, operand 0, single buffered']
    #allocation4 [shape = 's32[1]{0}', space=sflag, size = 0x4, scoped, tag = 'scoped memory for tpu_custom_call.1']
    %6 = vsyncpa [#allocation4], 0
    // Predicated region
    $region2: #{tpu_custom_call.1} parent=1 // pred_check
      _
    $region3: #{tpu_custom_call.1} parent=1 // pred_check_branch
      %8 = sbr.rel (0) target = $region5
    $region4: #{tpu_custom_call.1} parent=1 // pred_region
      %10 = vsyncadd [#allocation4], 0
      %s12 = sshll.u32 %s0, 4
      %s13 = int_to_ptr.hbm [resolvable:$true] %s12
      %s14 = sshll.u32 [#allocation3], 4
      %s15 = int_to_ptr.vmem [resolvable:$true] %s14
      %17 = dma.hbm_to_vmem [thread:$0]  %s13, 256, %s15, [#allocation4]
    $region5: #{tpu_custom_call.1} parent=1 // pred_fallthru
      _
    // Predicated region
    $region6: #{tpu_custom_call.1} parent=1 // pred_check
      _
    $region7: #{tpu_custom_call.1} parent=1 // pred_check_branch
      %19 = sbr.rel (0) target = $region9
    $region8: #{tpu_custom_call.1} parent=1 // pred_region
      %21 = dma.done [#allocation4], 256
    $region9: #{tpu_custom_call.1} parent=1 // pred_fallthru
      _
    %p22 = scmp.eq.s32.totalorder 0, 0
    // Predicated region
    $region10: #{tpu_custom_call.1} parent=1 // pred_check
      %p23 = pneg %p22
    $region11: #{tpu_custom_call.1} parent=1 // pred_check_branch
      %25 = sbr.rel (%p23) target = $region13
    $region12: #{tpu_custom_call.1} parent=1 // pred_region
      %vm26 = vcmask 7168
      %27 = vst.msk [vmem:[#allocation2] sm:$0xff] %vm26, 0.0
    $region13: #{tpu_custom_call.1} parent=1 // pred_fallthru
      _
    %v28 = vld [vmem:[#allocation3] sm:$0xff]
    %v29 = vld [vmem:[#allocation3 + $0x8] sm:$0xff]
    %v30 = vld [vmem:[#allocation2] sm:$0xff]
    %v31 = vadd.f32 %v28, %v29
    %32 = vadd.xlane.f32.xlu0 %v31
    %v33 = vpop.xlane.xlu0 %32
    %v34 = vadd.f32 %v30, %v33
    %vm35 = vcmask 7168
    %36 = vst.msk [vmem:[#allocation2] sm:$0xff] %vm35, %v34
    // Predicated region
    $region14: #{tpu_custom_call.1} parent=1 // pred_check
      %p37 = pneg %p22
    $region15: #{tpu_custom_call.1} parent=1 // pred_check_branch
      %39 = sbr.rel (%p37) target = $region17
    $region16: #{tpu_custom_call.1} parent=1 // pred_region
      %v40 = vld [vmem:[#allocation2] sm:$0xff]
      %v41 = vmul.f32 %v40, 0.00390625
      %42 = vst.msk [vmem:[%s1] sm:$0xff] %vm35, %v41
    $region17: #{tpu_custom_call.1} parent=1 // pred_fallthru
      _
    // Predicated region
    $region18: #{tpu_custom_call.1} parent=1 // pred_check
      _
    $region19: #{tpu_custom_call.1} parent=1 // pred_check_branch
      %44 = sbr.rel (0) target = $region21
    $region20: #{tpu_custom_call.1} parent=1 // pred_region
      _
    $region21: #{tpu_custom_call.1} parent=1 // pred_fallthru
      _
    // Predicated region
    $region22: #{tpu_custom_call.1} parent=1 // pred_check
      _
    $region23: #{tpu_custom_call.1} parent=1 // pred_check_branch
      %46 = sbr.rel (0) target = $region25
    $region24: #{tpu_custom_call.1} parent=1 // pred_region
      _
    $region25: #{tpu_custom_call.1} parent=1 // pred_fallthru
      _
    %47 = vsyncpa [#allocation4], 1

</llo_original>
